<compile_context>
chip_gen: v5e
topology: v5e:2x2
jax: 0.10.0
libtpu: 0.0.40
codegen_flags: <defaults>
</compile_context>

<pallas_src>
import functools

import jax
import jax.numpy as jnp
from jax.experimental import pallas as pl
from jax.experimental.pallas import tpu as pltpu


def _round_up(v, m):
    return (v + m - 1) // m * m


def _block_kernel(x_ref, w1_ref, b1_ref, w2_ref, b2_ref, o_ref, *, img_w):
    """One grid step = one image.

    x_ref : (1, Cin_p, H*W)   channels on sublanes, spatial on lanes
    w1_ref: (C1_p, 9*Cin_p)   3x3 taps fused on the contraction axis
    b1_ref: (C1_p, 1)
    w2_ref: (C2, 9*C1_p)
    b2_ref: (C2, 1)
    o_ref : (1, C2, H*W)      full-grid conv result (VALID crop in wrapper)
    """
    x = x_ref[0]                                   # (Cin_p, HW)
    hw = x.shape[1]

    def im2col(a):
        # Row block k of the result is `a` shifted left by ky*W + kx
        # (k = ky*3 + kx): an XLU lane rotate, no slice/reshape copies.
        pieces = []
        for k in range(9):
            ky, kx = divmod(k, 3)
            off = ky * img_w + kx
            pieces.append(a if off == 0 else pltpu.roll(a, hw - off, axis=1))
        return jnp.concatenate(pieces, axis=0)     # (9*C, HW)

    # conv1 + bias + ReLU : single (C1_p, 9*Cin_p) x (9*Cin_p, HW) MXU matmul.
    h = jnp.dot(w1_ref[...], im2col(x), preferred_element_type=jnp.float32)
    h = jnp.maximum(h + b1_ref[...], 0.0)          # (C1_p, HW)

    # conv2 + bias : single (C2, 9*C1_p) x (9*C1_p, HW) MXU matmul.
    y = jnp.dot(w2_ref[...], im2col(h), preferred_element_type=jnp.float32)
    o_ref[0] = y + b2_ref[...]                     # lane-dense full store


def block_forward(x_nchw, w1, b1, w2, b2):
    """Pallas Block forward.

    x_nchw: (N, Cin, H, W)  float32
    w1:     (C1, Cin, 3, 3) float32   (PyTorch OIHW)
    b1:     (C1,)
    w2:     (C2, C1, 3, 3)
    b2:     (C2,)
    returns (N, C2, H-4, W-4)   (two VALID 3x3 convs)
    """
    N, Cin, H, W = x_nchw.shape
    C1 = w1.shape[0]
    C2 = w2.shape[0]
    Ho, Wo = H - 4, W - 4
    HW = H * W

    # Pad channel counts to multiples of 8 so every sublane group in the
    # kernel stays tile aligned (extra contraction depth is free on the MXU).
    Cin_p = _round_up(Cin, 8)
    C1_p = _round_up(C1, 8)

    # Layout plumbing (plain JAX, cheap / fused in XLA):
    #   activations: NCHW -> (N, Cin_p, H*W)   spatial flattened onto lanes
    #   weights:     OIHW -> (Cout, 9*Cin_p)   taps fused onto contraction
    x_flat = jnp.pad(x_nchw.astype(jnp.float32),
                     ((0, 0), (0, Cin_p - Cin), (0, 0), (0, 0))
                     ).reshape(N, Cin_p, HW)

    w1_flat = jnp.pad(jnp.transpose(w1.astype(jnp.float32), (0, 2, 3, 1)),
                      ((0, C1_p - C1), (0, 0), (0, 0), (0, Cin_p - Cin))
                      ).reshape(C1_p, 9 * Cin_p)
    b1_col = jnp.pad(b1.astype(jnp.float32), (0, C1_p - C1)).reshape(C1_p, 1)

    w2_flat = jnp.pad(jnp.transpose(w2.astype(jnp.float32), (0, 2, 3, 1)),
                      ((0, 0), (0, 0), (0, 0), (0, C1_p - C1))
                      ).reshape(C2, 9 * C1_p)
    b2_col = b2.astype(jnp.float32).reshape(C2, 1)

    kernel = functools.partial(_block_kernel, img_w=W)

    out_full = pl.pallas_call(
        kernel,
        out_shape=jax.ShapeDtypeStruct((N, C2, HW), jnp.float32),
        grid_spec=pltpu.PrefetchScalarGridSpec(
            num_scalar_prefetch=0,
            grid=(N,),
            # NOTE: for real UNet image sizes, add an H-row grid axis with a
            # 4-row halo (bounds VMEM on v7x's 64 MiB and feeds both
            # TensorCores); the 16x16 demo image is tiny so one image per
            # grid step already sits well inside VMEM.
            in_specs=[
                pl.BlockSpec((1, Cin_p, HW), lambda n: (n, 0, 0)),
                pl.BlockSpec((C1_p, 9 * Cin_p), lambda n: (0, 0)),
                pl.BlockSpec((C1_p, 1), lambda n: (0, 0)),
                pl.BlockSpec((C2, 9 * C1_p), lambda n: (0, 0)),
                pl.BlockSpec((C2, 1), lambda n: (0, 0)),
            ],
            out_specs=pl.BlockSpec((1, C2, HW), lambda n: (n, 0, 0)),
        ),
        compiler_params=pltpu.CompilerParams(
            dimension_semantics=("parallel",)),
    )(x_flat, w1_flat, b1_col, w2_flat, b2_col)

    # out_full[n, o, y*W + x] is the full-grid conv result; the VALID region
    # is y < H-4, x < W-4.  Reshape is free, the crop is a cheap XLA slice.
    return out_full.reshape(N, C2, H, W)[:, :, :Ho, :Wo]


def _reference_block(x, w1, b1, w2, b2):
    """Pure-JAX (XLA) reference with PyTorch NCHW/OIHW semantics."""
    dn = ("NCHW", "OIHW", "NCHW")
    y = jax.lax.conv_general_dilated(x, w1, (1, 1), "VALID",
                                     dimension_numbers=dn)
    y = jnp.maximum(y + b1[None, :, None, None], 0.0)
    y = jax.lax.conv_general_dilated(y, w2, (1, 1), "VALID",
                                     dimension_numbers=dn)
    return y + b2[None, :, None, None]


if __name__ == "__main__":
    # Small deterministic config: batch=2, in_channels=4, out_channels=8, 16x16
    N, Cin, Cout, H, W = 2, 4, 8, 16, 16

    key = jax.random.PRNGKey(0)
    kx, kw1, kb1, kw2, kb2 = jax.random.split(key, 5)

    x = jax.random.normal(kx, (N, Cin, H, W), dtype=jnp.float32)

    # PyTorch-style uniform(-1/sqrt(fan_in), 1/sqrt(fan_in)) init, deterministic
    fan1 = Cin * 9
    w1 = jax.random.uniform(kw1, (Cout, Cin, 3, 3), jnp.float32,
                            -1.0 / fan1 ** 0.5, 1.0 / fan1 ** 0.5)
    b1 = jax.random.uniform(kb1, (Cout,), jnp.float32,
                            -1.0 / fan1 ** 0.5, 1.0 / fan1 ** 0.5)
    fan2 = Cout * 9
    w2 = jax.random.uniform(kw2, (Cout, Cout, 3, 3), jnp.float32,
                            -1.0 / fan2 ** 0.5, 1.0 / fan2 ** 0.5)
    b2 = jax.random.uniform(kb2, (Cout,), jnp.float32,
                            -1.0 / fan2 ** 0.5, 1.0 / fan2 ** 0.5)

    out = jax.block_until_ready(block_forward(x, w1, b1, w2, b2))
    ref = jax.block_until_ready(_reference_block(x, w1, b1, w2, b2))

    assert out.shape == (N, Cout, H - 4, W - 4), out.shape
    # f32 accumulation; tolerance covers different summation order vs XLA conv.
    assert jnp.allclose(out, ref, atol=1e-3, rtol=1e-3), \
        float(jnp.max(jnp.abs(out - ref)))

    print("KERNEL_OK")
</pallas_src>

<mosaic_0001>
module attributes {stable_mosaic.version = 11 : i64} {
  func.func @_block_kernel(%arg0: i32, %arg1: memref<1x8x256xf32, #tpu.memory_space<vmem>>, %arg2: memref<8x72xf32, #tpu.memory_space<vmem>>, %arg3: memref<8x1xf32, #tpu.memory_space<vmem>>, %arg4: memref<8x72xf32, #tpu.memory_space<vmem>>, %arg5: memref<8x1xf32, #tpu.memory_space<vmem>>, %arg6: memref<1x8x256xf32, #tpu.memory_space<vmem>>) attributes {dimension_semantics = [#tpu.dimension_semantics<parallel>], iteration_bounds = array<i64: 2>, scalar_prefetch = 0 : i64, scratch_operands = 0 : i64, tpu.core_type = #tpu.core_type<tc>, window_params = [{transform_indices = @transform_0, window_bounds = array<i64: 1, 8, 256>}, {pipeline_mode = #tpu.pipeline_mode<synchronous>, transform_indices = @transform_1, window_bounds = array<i64: 8, 72>}, {pipeline_mode = #tpu.pipeline_mode<synchronous>, transform_indices = @transform_2, window_bounds = array<i64: 8, 1>}, {pipeline_mode = #tpu.pipeline_mode<synchronous>, transform_indices = @transform_3, window_bounds = array<i64: 8, 72>}, {pipeline_mode = #tpu.pipeline_mode<synchronous>, transform_indices = @transform_4, window_bounds = array<i64: 8, 1>}, {transform_indices = @transform_5, window_bounds = array<i64: 1, 8, 256>}]} {
    %c0 = arith.constant 0 : index
    %c0_0 = arith.constant 0 : index
    %c0_1 = arith.constant 0 : index
    %0 = vector.load %arg1[%c0, %c0_0, %c0_1] : memref<1x8x256xf32, #tpu.memory_space<vmem>>, vector<1x8x256xf32>
    %1 = vector.shape_cast %0 : vector<1x8x256xf32> to vector<8x256xf32>
    %c0_2 = arith.constant 0 : index
    %c0_3 = arith.constant 0 : index
    %2 = vector.load %arg2[%c0_2, %c0_3] : memref<8x72xf32, #tpu.memory_space<vmem>>, vector<8x72xf32>
    %c255_i32 = arith.constant 255 : i32
    %3 = tpu.dynamic_rotate %1 by %c255_i32 dim 1 : vector<8x256xf32>, i32 -> vector<8x256xf32>
    %c254_i32 = arith.constant 254 : i32
    %4 = tpu.dynamic_rotate %1 by %c254_i32 dim 1 : vector<8x256xf32>, i32 -> vector<8x256xf32>
    %c240_i32 = arith.constant 240 : i32
    %5 = tpu.dynamic_rotate %1 by %c240_i32 dim 1 : vector<8x256xf32>, i32 -> vector<8x256xf32>
    %c239_i32 = arith.constant 239 : i32
    %6 = tpu.dynamic_rotate %1 by %c239_i32 dim 1 : vector<8x256xf32>, i32 -> vector<8x256xf32>
    %c238_i32 = arith.constant 238 : i32
    %7 = tpu.dynamic_rotate %1 by %c238_i32 dim 1 : vector<8x256xf32>, i32 -> vector<8x256xf32>
    %c224_i32 = arith.constant 224 : i32
    %8 = tpu.dynamic_rotate %1 by %c224_i32 dim 1 : vector<8x256xf32>, i32 -> vector<8x256xf32>
    %c223_i32 = arith.constant 223 : i32
    %9 = tpu.dynamic_rotate %1 by %c223_i32 dim 1 : vector<8x256xf32>, i32 -> vector<8x256xf32>
    %c222_i32 = arith.constant 222 : i32
    %10 = tpu.dynamic_rotate %1 by %c222_i32 dim 1 : vector<8x256xf32>, i32 -> vector<8x256xf32>
    %11 = tpu.concatenate %1, %3, %4, %5, %6, %7, %8, %9, %10 in 0 : vector<8x256xf32>, vector<8x256xf32>, vector<8x256xf32>, vector<8x256xf32>, vector<8x256xf32>, vector<8x256xf32>, vector<8x256xf32>, vector<8x256xf32>, vector<8x256xf32> -> vector<72x256xf32>
    %cst = arith.constant dense<0.000000e+00> : vector<8x256xf32>
    %12 = tpu.matmul %2, %11, %cst {dimension_numbers = #tpu.dot_dimension_numbers<[1], [0], [0], [1], [0, 0, 1, 1], [], []>} : vector<8x72xf32>, vector<72x256xf32>, vector<8x256xf32> -> vector<8x256xf32>
    %c0_4 = arith.constant 0 : index
    %c0_5 = arith.constant 0 : index
    %13 = vector.load %arg3[%c0_4, %c0_5] : memref<8x1xf32, #tpu.memory_space<vmem>>, vector<8x1xf32>
    %14 = vector.broadcast %13 : vector<8x1xf32> to vector<8x256xf32>
    %15 = arith.addf %12, %14 : vector<8x256xf32>
    %cst_6 = arith.constant 0.000000e+00 : f32
    %16 = vector.broadcast %cst_6 : f32 to vector<8x256xf32>
    %17 = arith.maximumf %15, %16 : vector<8x256xf32>
    %c0_7 = arith.constant 0 : index
    %c0_8 = arith.constant 0 : index
    %18 = vector.load %arg4[%c0_7, %c0_8] : memref<8x72xf32, #tpu.memory_space<vmem>>, vector<8x72xf32>
    %c255_i32_9 = arith.constant 255 : i32
    %19 = tpu.dynamic_rotate %17 by %c255_i32_9 dim 1 : vector<8x256xf32>, i32 -> vector<8x256xf32>
    %c254_i32_10 = arith.constant 254 : i32
    %20 = tpu.dynamic_rotate %17 by %c254_i32_10 dim 1 : vector<8x256xf32>, i32 -> vector<8x256xf32>
    %c240_i32_11 = arith.constant 240 : i32
    %21 = tpu.dynamic_rotate %17 by %c240_i32_11 dim 1 : vector<8x256xf32>, i32 -> vector<8x256xf32>
    %c239_i32_12 = arith.constant 239 : i32
    %22 = tpu.dynamic_rotate %17 by %c239_i32_12 dim 1 : vector<8x256xf32>, i32 -> vector<8x256xf32>
    %c238_i32_13 = arith.constant 238 : i32
    %23 = tpu.dynamic_rotate %17 by %c238_i32_13 dim 1 : vector<8x256xf32>, i32 -> vector<8x256xf32>
    %c224_i32_14 = arith.constant 224 : i32
    %24 = tpu.dynamic_rotate %17 by %c224_i32_14 dim 1 : vector<8x256xf32>, i32 -> vector<8x256xf32>
    %c223_i32_15 = arith.constant 223 : i32
    %25 = tpu.dynamic_rotate %17 by %c223_i32_15 dim 1 : vector<8x256xf32>, i32 -> vector<8x256xf32>
    %c222_i32_16 = arith.constant 222 : i32
    %26 = tpu.dynamic_rotate %17 by %c222_i32_16 dim 1 : vector<8x256xf32>, i32 -> vector<8x256xf32>
    %27 = tpu.concatenate %17, %19, %20, %21, %22, %23, %24, %25, %26 in 0 : vector<8x256xf32>, vector<8x256xf32>, vector<8x256xf32>, vector<8x256xf32>, vector<8x256xf32>, vector<8x256xf32>, vector<8x256xf32>, vector<8x256xf32>, vector<8x256xf32> -> vector<72x256xf32>
    %cst_17 = arith.constant dense<0.000000e+00> : vector<8x256xf32>
    %28 = tpu.matmul %18, %27, %cst_17 {dimension_numbers = #tpu.dot_dimension_numbers<[1], [0], [0], [1], [0, 0, 1, 1], [], []>} : vector<8x72xf32>, vector<72x256xf32>, vector<8x256xf32> -> vector<8x256xf32>
    %c0_18 = arith.constant 0 : index
    %c0_19 = arith.constant 0 : index
    %29 = vector.load %arg5[%c0_18, %c0_19] : memref<8x1xf32, #tpu.memory_space<vmem>>, vector<8x1xf32>
    %30 = vector.broadcast %29 : vector<8x1xf32> to vector<8x256xf32>
    %31 = arith.addf %28, %30 : vector<8x256xf32>
    %c0_20 = arith.constant 0 : index
    %c0_21 = arith.constant 0 : index
    %c0_22 = arith.constant 0 : index
    %32 = vector.load %arg6[%c0_20, %c0_21, %c0_22] : memref<1x8x256xf32, #tpu.memory_space<vmem>>, vector<1x8x256xf32>
    %33 = vector.shape_cast %32 : vector<1x8x256xf32> to vector<8x256xf32>
    %34 = vector.shape_cast %31 : vector<8x256xf32> to vector<1x8x256xf32>
    tpu.vector_store %arg6[%c0_20, %c0_21, %c0_22], %34 {strides = array<i32>} : memref<1x8x256xf32, #tpu.memory_space<vmem>>, vector<1x8x256xf32>,
    return
  }
  func.func @transform_0(%arg0: i32) -> (i32, i32, i32) {
    %c0_i32 = arith.constant 0 : i32
    %c0_i32_0 = arith.constant 0 : i32
    %c0_i32_1 = arith.constant 0 : i32
    return %arg0, %c0_i32, %c0_i32_0 : i32, i32, i32
  }
  func.func @transform_1(%arg0: i32) -> (i32, i32) {
    %c0_i32 = arith.constant 0 : i32
    %c0_i32_0 = arith.constant 0 : i32
    %c0_i32_1 = arith.constant 0 : i32
    return %c0_i32, %c0_i32_0 : i32, i32
  }
  func.func @transform_2(%arg0: i32) -> (i32, i32) {
    %c0_i32 = arith.constant 0 : i32
    %c0_i32_0 = arith.constant 0 : i32
    %c0_i32_1 = arith.constant 0 : i32
    return %c0_i32, %c0_i32_0 : i32, i32
  }
  func.func @transform_3(%arg0: i32) -> (i32, i32) {
    %c0_i32 = arith.constant 0 : i32
    %c0_i32_0 = arith.constant 0 : i32
    %c0_i32_1 = arith.constant 0 : i32
    return %c0_i32, %c0_i32_0 : i32, i32
  }
  func.func @transform_4(%arg0: i32) -> (i32, i32) {
    %c0_i32 = arith.constant 0 : i32
    %c0_i32_0 = arith.constant 0 : i32
    %c0_i32_1 = arith.constant 0 : i32
    return %c0_i32, %c0_i32_0 : i32, i32
  }
  func.func @transform_5(%arg0: i32) -> (i32, i32, i32) {
    %c0_i32 = arith.constant 0 : i32
    %c0_i32_0 = arith.constant 0 : i32
    %c0_i32_1 = arith.constant 0 : i32
    return %arg0, %c0_i32, %c0_i32_0 : i32, i32, i32
  }
}

</mosaic_0001>

<llo_original>
// kernel: tpu_custom_call.1
$region0: #{tpu_custom_call.1}
  #allocation0 [shape = 'u32[]', space=smem, size = 0x4, offset = 0x4, fixed_abs, tag = 'smem constant byte address 0x4 - core index']
  #allocation1 [shape = 'u32[72,128]{1,0:T(1,128)}', space=vmem, size = 0x9000, scoped, tag = 'internal scratch']
  %s0 = inlined_call_operand.hbm [shape: f32[2,8,256], index: 0, kind: input, shape index: {}]
  %s1 = inlined_call_operand.vmem [shape: f32[8,72], index: 1, kind: input, shape index: {}]
  %s2 = inlined_call_operand.vmem [shape: f32[8,1], index: 2, kind: input, shape index: {}]
  %s3 = inlined_call_operand.vmem [shape: f32[8,72], index: 3, kind: input, shape index: {}]
  %s4 = inlined_call_operand.vmem [shape: f32[8,1], index: 4, kind: input, shape index: {}]
  %s5 = inlined_call_operand.hbm [shape: f32[2,8,256], index: 5, kind: output, shape index: {}]
  %s6 = sld [smem:[#allocation0]]
  $region57: #{tpu_custom_call.1} parent=0
    _
  %s8 = ssub.s32 1, %s6
  %s9 = scalar_select 0, %s8, %s6
  $region1: #{tpu_custom_call.1} parent=0
    #allocation2 [shape = 'u8[16384]{0}', space=vmem, size = 0x4000, scoped, tag = 'input window, operand 0']
    #allocation3 [shape = 's32[2]{0}', space=sflag, size = 0x8, scoped, tag = 'scoped memory for tpu_custom_call.1']
    #allocation4 [shape = 's32[2]{0}', space=sflag, size = 0x8, scoped, tag = 'scoped memory for tpu_custom_call.1']
    #allocation5 [shape = 'u8[16384]{0}', space=vmem, size = 0x4000, scoped, tag = 'output window, operand 0']
    %10 = vsyncpa [#allocation3], 0
    %s11 = scalar_lea.sflag [#allocation3], 1
    %12 = vsyncpa %s11, 0
    %13 = vsyncpa [#allocation4], 0
    %s14 = scalar_lea.sflag [#allocation4], 1
    %15 = vsyncpa %s14, 0
    loop: start=0, step=1, limit=4
    $region2: #{tpu_custom_call.1} parent=1 // loop_pre_header
      _
    $region3: #{tpu_custom_call.1} parent=1 // loop_header
      %s17 = sphi 0, %s21
      %p18 = scmp.ge.s32.totalorder %s17, 4
      %s27 = sphi 0, %s29
      %s30 = sphi 0, %s27
      %s31 = sphi 0, %s30
      %s47 = sphi 0, %s31
      %s51 = sphi 0, %s51
      %s53 = sphi 0, %s51
      %s54 = sphi 0, %s53
      %s68 = sphi 0, %s54
      %s72 = sphi 0, %s72
      %s74 = sphi 0, %s72
      %s75 = sphi 0, %s74
      %s89 = sphi 0, %s75
      %s93 = sphi 0, %s93
      %s95 = sphi 0, %s93
      %s96 = sphi 0, %s95
      %s110 = sphi 0, %s96
      %s114 = sphi 0, %s114
      %s116 = sphi 0, %s114
      %s117 = sphi 0, %s116
      %s131 = sphi 0, %s117
      %s137 = sphi 0, %s139
      %s140 = sphi 0, %s137
      %s141 = sphi 0, %s140
      %s157 = sphi 0, %s141
    $region4: #{tpu_custom_call.1} parent=1 // loop_header_branch
      %20 = sbr.rel (%p18) target = $region8
    $region5: #{tpu_custom_call.1} parent=1 // loop_body
      %s22 = ssub.s32 %s17, 1
      %s23 = ssub.s32 %s17, 2
      %s24 = sadd.s32 %s17, 1
      %s25 = ssub.s32 %s17, %s24
      %p26 = scmp.eq.s32.totalorder %s25, 0
      %s28 = sadd.s32 %s27, 1
      %s29 = scalar_select %p26, %s27, %s28
      %p32 = pneg %p26
      %p33 = scmp.eq.s32.totalorder %s17, 1
      %p34 = por %p32, %p33
      %p35 = scmp.ne.s32.totalorder %s27, %s30
      %p36 = scmp.eq.s32.totalorder %s17, 0
      %p37 = por %p35, %p36
      %p38 = scmp.ne.s32.totalorder %s27, %s30
      %p39 = scmp.eq.s32.totalorder %s22, 1
      %p40 = por %p38, %p39
      %p41 = scmp.ne.s32.totalorder %s30, %s31
      %p42 = scmp.eq.s32.totalorder %s22, 0
      %p43 = por %p41, %p42
      %p44 = scmp.ne.s32.totalorder %s30, %s31
      %p45 = scmp.eq.s32.totalorder %s23, 1
      %p46 = por %p44, %p45
      %p48 = scmp.ne.s32.totalorder %s31, %s47
      %p49 = scmp.eq.s32.totalorder %s23, 0
      %p50 = por %p48, %p49
      %s52 = sadd.s32 %s51, 1
      %p55 = scmp.eq.s32.totalorder %s17, 1
      %p56 = scmp.ne.s32.totalorder %s51, %s53
      %p57 = scmp.eq.s32.totalorder %s17, 0
      %p58 = por %p56, %p57
      %p59 = scmp.ne.s32.totalorder %s51, %s53
      %p60 = scmp.eq.s32.totalorder %s22, 1
      %p61 = por %p59, %p60
      %p62 = scmp.ne.s32.totalorder %s53, %s54
      %p63 = scmp.eq.s32.totalorder %s22, 0
      %p64 = por %p62, %p63
      %p65 = scmp.ne.s32.totalorder %s53, %s54
      %p66 = scmp.eq.s32.totalorder %s23, 1
      %p67 = por %p65, %p66
      %p69 = scmp.ne.s32.totalorder %s54, %s68
      %p70 = scmp.eq.s32.totalorder %s23, 0
      %p71 = por %p69, %p70
      %s73 = sadd.s32 %s72, 1
      %p76 = scmp.eq.s32.totalorder %s17, 1
      %p77 = scmp.ne.s32.totalorder %s72, %s74
      %p78 = scmp.eq.s32.totalorder %s17, 0
      %p79 = por %p77, %p78
      %p80 = scmp.ne.s32.totalorder %s72, %s74
      %p81 = scmp.eq.s32.totalorder %s22, 1
      %p82 = por %p80, %p81
      %p83 = scmp.ne.s32.totalorder %s74, %s75
      %p84 = scmp.eq.s32.totalorder %s22, 0
      %p85 = por %p83, %p84
      %p86 = scmp.ne.s32.totalorder %s74, %s75
      %p87 = scmp.eq.s32.totalorder %s23, 1
      %p88 = por %p86, %p87
      %p90 = scmp.ne.s32.totalorder %s75, %s89
      %p91 = scmp.eq.s32.totalorder %s23, 0
      %p92 = por %p90, %p91
      %s94 = sadd.s32 %s93, 1
      %p97 = scmp.eq.s32.totalorder %s17, 1
      %p98 = scmp.ne.s32.totalorder %s93, %s95
      %p99 = scmp.eq.s32.totalorder %s17, 0
      %p100 = por %p98, %p99
      %p101 = scmp.ne.s32.totalorder %s93, %s95
      %p102 = scmp.eq.s32.totalorder %s22, 1
      %p103 = por %p101, %p102
      %p104 = scmp.ne.s32.totalorder %s95, %s96
      %p105 = scmp.eq.s32.totalorder %s22, 0
      %p106 = por %p104, %p105
      %p107 = scmp.ne.s32.totalorder %s95, %s96
      %p108 = scmp.eq.s32.totalorder %s23, 1
      %p109 = por %p107, %p108
      %p111 = scmp.ne.s32.totalorder %s96, %s110
      %p112 = scmp.eq.s32.totalorder %s23, 0
      %p113 = por %p111, %p112
      %s115 = sadd.s32 %s114, 1
      %p118 = scmp.eq.s32.totalorder %s17, 1
      %p119 = scmp.ne.s32.totalorder %s114, %s116
      %p120 = scmp.eq.s32.totalorder %s17, 0
      %p121 = por %p119, %p120
      %p122 = scmp.ne.s32.totalorder %s114, %s116
      %p123 = scmp.eq.s32.totalorder %s22, 1
      %p124 = por %p122, %p123
      %p125 = scmp.ne.s32.totalorder %s116, %s117
      %p126 = scmp.eq.s32.totalorder %s22, 0
      %p127 = por %p125, %p126
      %p128 = scmp.ne.s32.totalorder %s116, %s117
      %p129 = scmp.eq.s32.totalorder %s23, 1
      %p130 = por %p128, %p129
      %p132 = scmp.ne.s32.totalorder %s117, %s131
      %p133 = scmp.eq.s32.totalorder %s23, 0
      %p134 = por %p132, %p133
      %s135 = ssub.s32 %s17, %s24
      %p136 = scmp.eq.s32.totalorder %s135, 0
      %s138 = sadd.s32 %s137, 1
      %s139 = scalar_select %p136, %s137, %s138
      %p142 = pneg %p136
      %p143 = scmp.eq.s32.totalorder %s17, 1
      %p144 = por %p142, %p143
      %p145 = scmp.ne.s32.totalorder %s137, %s140
      %p146 = scmp.eq.s32.totalorder %s17, 0
      %p147 = por %p145, %p146
      %p148 = scmp.ne.s32.totalorder %s137, %s140
      %p149 = scmp.eq.s32.totalorder %s22, 1
      %p150 = por %p148, %p149
      %p151 = scmp.ne.s32.totalorder %s140, %s141
      %p152 = scmp.eq.s32.totalorder %s22, 0
      %p153 = por %p151, %p152
      %p154 = scmp.ne.s32.totalorder %s140, %s141
      %p155 = scmp.eq.s32.totalorder %s23, 1
      %p156 = por %p154, %p155
      %p158 = scmp.ne.s32.totalorder %s141, %s157
      %p159 = scmp.eq.s32.totalorder %s23, 0
      %p160 = por %p158, %p159
      %p161 = scmp.le.s32.totalorder 1, %s17
      %p162 = scmp.lt.s32.totalorder %s17, 3
      %p163 = pnand %p161, %p162
      %p164 = pneg %p163
      // Predicated region
      $region9: #{tpu_custom_call.1} parent=5 // pred_check
        _
      $region10: #{tpu_custom_call.1} parent=5 // pred_check_branch
        %166 = sbr.rel (%p163) target = $region12
      $region11: #{tpu_custom_call.1} parent=5 // pred_region
        %s167 = ssub.s32 %s17, 1
        // Predicated region
        $region13: #{tpu_custom_call.1} parent=11 // pred_check
          %p168 = pneg %p64
        $region14: #{tpu_custom_call.1} parent=11 // pred_check_branch
          %170 = sbr.rel (%p168) target = $region16
        $region15: #{tpu_custom_call.1} parent=11 // pred_region
          _
        $region16: #{tpu_custom_call.1} parent=11 // pred_fallthru
          _
        // Predicated region
        $region17: #{tpu_custom_call.1} parent=11 // pred_check
          %p171 = pneg %p85
        $region18: #{tpu_custom_call.1} parent=11 // pred_check_branch
          %173 = sbr.rel (%p171) target = $region20
        $region19: #{tpu_custom_call.1} parent=11 // pred_region
          _
        $region20: #{tpu_custom_call.1} parent=11 // pred_fallthru
          _
        // Predicated region
        $region21: #{tpu_custom_call.1} parent=11 // pred_check
          %p174 = pneg %p106
        $region22: #{tpu_custom_call.1} parent=11 // pred_check_branch
          %176 = sbr.rel (%p174) target = $region24
        $region23: #{tpu_custom_call.1} parent=11 // pred_region
          _
        $region24: #{tpu_custom_call.1} parent=11 // pred_fallthru
          _
        // Predicated region
        $region25: #{tpu_custom_call.1} parent=11 // pred_check
          %p177 = pneg %p127
        $region26: #{tpu_custom_call.1} parent=11 // pred_check_branch
          %179 = sbr.rel (%p177) target = $region28
        $region27: #{tpu_custom_call.1} parent=11 // pred_region
          _
        $region28: #{tpu_custom_call.1} parent=11 // pred_fallthru
          _
      $region12: #{tpu_custom_call.1} parent=5 // pred_fallthru
        _
      %p180 = scmp.lt.s32.totalorder %s17, 2
      // Predicated region
      $region29: #{tpu_custom_call.1} parent=5 // pred_check
        %p181 = pneg %p180
      $region30: #{tpu_custom_call.1} parent=5 // pred_check_branch
        %183 = sbr.rel (%p181) target = $region32
      $region31: #{tpu_custom_call.1} parent=5 // pred_region
        // Predicated region
        $region33: #{tpu_custom_call.1} parent=31 // pred_check
          %p184 = pneg %p37
        $region34: #{tpu_custom_call.1} parent=31 // pred_check_branch
          %186 = sbr.rel (%p184) target = $region36
        $region35: #{tpu_custom_call.1} parent=31 // pred_region
          %s187 = sand.u32 %s27, 1
          %s188 = scalar_lea.sflag [#allocation3], %s187
          %s189 = sand.u32 %s27, 1
          %s190 = smul.addr %s189, 16
          %s191 = scalar_lea.vmem [#allocation2], %s190
          %193 = vsyncadd %s188, 0
          %s194 = smul.addr %s17, 2
          %s195 = smul.addr %s194, 8
          %s196 = scalar_lea.hbm %s0, %s195
          %s198 = sshll.u32 %s196, 4
          %s199 = int_to_ptr.hbm [resolvable:$true] %s198
          %s200 = sshll.u32 %s191, 4
          %s201 = int_to_ptr.vmem [resolvable:$true] %s200
          %203 = dma.hbm_to_vmem [thread:$0]  %s199, 256, %s201, %s188
        $region36: #{tpu_custom_call.1} parent=31 // pred_fallthru
          _
      $region32: #{tpu_custom_call.1} parent=5 // pred_fallthru
        _
      %p204 = scmp.le.s32.totalorder 1, %s17
      %p205 = scmp.lt.s32.totalorder %s17, 3
      %p206 = pnand %p204, %p205
      %p207 = pneg %p206
      // Predicated region
      $region37: #{tpu_custom_call.1} parent=5 // pred_check
        _
      $region38: #{tpu_custom_call.1} parent=5 // pred_check_branch
        %209 = sbr.rel (%p206) target = $region40
      $region39: #{tpu_custom_call.1} parent=5 // pred_region
        %s210 = ssub.s32 %s17, 1
        %s211 = sand.u32 %s30, 1
        %s212 = scalar_lea.sflag [#allocation3], %s211
        %s213 = sand.u32 %s30, 1
        %s214 = smul.addr %s213, 16
        %s215 = scalar_lea.vmem [#allocation2], %s214
        // Predicated region
        $region41: #{tpu_custom_call.1} parent=39 // pred_check
          %p216 = pneg %p43
        $region42: #{tpu_custom_call.1} parent=39 // pred_check_branch
          %218 = sbr.rel (%p216) target = $region44
        $region43: #{tpu_custom_call.1} parent=39 // pred_region
          %220 = dma.done %s212, 256
        $region44: #{tpu_custom_call.1} parent=39 // pred_fallthru
          _
        %s221 = sand.u32 %s30, 1
        %s222 = scalar_lea.sflag [#allocation3], %s221
        %s223 = sand.u32 %s30, 1
        %s224 = smul.addr %s223, 16
        %s225 = scalar_lea.vmem [#allocation2], %s224
        %p226 = pneg %p43
        %p227 = pneg %p40
        %p228 = pneg %p64
        %p229 = pneg %p61
        %p230 = pneg %p85
        %p231 = pneg %p82
        %p232 = pneg %p106
        %p233 = pneg %p103
        %p234 = pneg %p127
        %p235 = pneg %p124
        %p236 = pneg %p153
        %p237 = pneg %p150
        %s238 = sand.u32 %s140, 1
        %s239 = scalar_lea.sflag [#allocation4], %s238
        %s240 = sand.u32 %s140, 1
        %s241 = smul.addr %s240, 16
        %s242 = scalar_lea.vmem [#allocation5], %s241
        %v243 = vld [vmem:[%s215] sm:$0xff]
        %v244 = vld [vmem:[%s215 + $0x8] sm:$0xff]
        %v245 = vld [vmem:[%s1] sm:$0xff]
        %246 = vrot.lane.b32.xlu0 %v243, 127
        %v247 = vpop.permute.xlu0 %246
        %248 = vrot.lane.b32.xlu0 %v244, 127
        %v249 = vpop.permute.xlu0 %248
        %v250 = vlaneseq
        %v251 = vand.u32 %v250, 127
        %vm252 = vcmp.lt.s32.totalorder %v251, 127
        %v253 = vsel %vm252, %v247, %v249
        %v254 = vsel %vm252, %v249, %v247
        %255 = vrot.lane.b32.xlu0 %v243, 126
        %v256 = vpop.permute.xlu0 %255
        %257 = vrot.lane.b32.xlu0 %v244, 126
        %v258 = vpop.permute.xlu0 %257
        %vm259 = vcmp.lt.s32.totalorder %v251, 126
        %v260 = vsel %vm259, %v256, %v258
        %v261 = vsel %vm259, %v258, %v256
        %262 = vrot.lane.b32.xlu0 %v243, 112
        %v263 = vpop.permute.xlu0 %262
        %264 = vrot.lane.b32.xlu0 %v244, 112
        %v265 = vpop.permute.xlu0 %264
        %vm266 = vcmp.lt.s32.totalorder %v251, 112
        %v267 = vsel %vm266, %v263, %v265
        %v268 = vsel %vm266, %v265, %v263
        %269 = vrot.lane.b32.xlu0 %v243, 111
        %v270 = vpop.permute.xlu0 %269
        %271 = vrot.lane.b32.xlu0 %v244, 111
        %v272 = vpop.permute.xlu0 %271
        %vm273 = vcmp.lt.s32.totalorder %v251, 111
        %v274 = vsel %vm273, %v270, %v272
        %v275 = vsel %vm273, %v272, %v270
        %276 = vrot.lane.b32.xlu0 %v243, 110
        %v277 = vpop.permute.xlu0 %276
        %278 = vrot.lane.b32.xlu0 %v244, 110
        %v279 = vpop.permute.xlu0 %278
        %vm280 = vcmp.lt.s32.totalorder %v251, 110
        %v281 = vsel %vm280, %v277, %v279
        %v282 = vsel %vm280, %v279, %v277
        %283 = vrot.lane.b32.xlu0 %v243, 96
        %v284 = vpop.permute.xlu0 %283
        %285 = vrot.lane.b32.xlu0 %v244, 96
        %v286 = vpop.permute.xlu0 %285
        %vm287 = vcmp.lt.s32.totalorder %v251, 96
        %v288 = vsel %vm287, %v284, %v286
        %v289 = vsel %vm287, %v286, %v284
        %290 = vrot.lane.b32.xlu0 %v243, 95
        %v291 = vpop.permute.xlu0 %290
        %292 = vrot.lane.b32.xlu0 %v244, 95
        %v293 = vpop.permute.xlu0 %292
        %vm294 = vcmp.lt.s32.totalorder %v251, 95
        %v295 = vsel %vm294, %v291, %v293
        %v296 = vsel %vm294, %v293, %v291
        %297 = vrot.lane.b32.xlu0 %v243, 94
        %v298 = vpop.permute.xlu0 %297
        %299 = vrot.lane.b32.xlu0 %v244, 94
        %v300 = vpop.permute.xlu0 %299
        %vm301 = vcmp.lt.s32.totalorder %v251, 94
        %v302 = vsel %vm301, %v298, %v300
        %v303 = vsel %vm301, %v300, %v298
        %v304 = vld [vmem:[%s2] sm:$0xff]
        %306 = vset.pattern.permute.xlu0 0
        %307 = vperm.xlu0 %306, %v304
        %v308 = vpop.permute.xlu0 %307
        %vm310 = vcmask 588800
        %v312 = vsel %vm310, %v245, 0
        %314 = vmatpush.msra.mxu0 0.0
        %315 = vmatpush.msra.mxu0 0.0
        %316 = vmatpush.msra.mxu0 0.0
        %317 = vmatpush.msra.mxu0 0.0
        %318 = vmatpush.msra.mxu0 0.0
        %319 = vmatpush.msra.mxu0 0.0
        %320 = vmatpush.msra.mxu0 0.0
        %321 = vmatpush.msra.mxu0 %v302
        %322 = vmatpush.msra.mxu0 %v295
        %323 = vmatpush.msra.mxu0 %v288
        %324 = vmatpush.msra.mxu0 %v281
        %325 = vmatpush.msra.mxu0 %v274
        %326 = vmatpush.msra.mxu0 %v267
        %327 = vmatpush.msra.mxu0 %v260
        %328 = vmatpush.msra.mxu0 %v253
        %329 = vmatpush.msra.mxu0 %v243
        %330 = vmatmul.f32.gmra.mxu0 %v312
        %v331 = vpop.f32.mrf.mxu0
        %v332 = vadd.f32 %v308, %v331
        %333 = vdwg.mxu0
        %334 = vmatpush.msra.mxu0 0.0
        %335 = vmatpush.msra.mxu0 0.0
        %336 = vmatpush.msra.mxu0 0.0
        %337 = vmatpush.msra.mxu0 0.0
        %338 = vmatpush.msra.mxu0 0.0
        %339 = vmatpush.msra.mxu0 0.0
        %340 = vmatpush.msra.mxu0 0.0
        %341 = vmatpush.msra.mxu0 %v303
        %342 = vmatpush.msra.mxu0 %v296
        %343 = vmatpush.msra.mxu0 %v289
        %344 = vmatpush.msra.mxu0 %v282
        %345 = vmatpush.msra.mxu0 %v275
        %346 = vmatpush.msra.mxu0 %v268
        %347 = vmatpush.msra.mxu0 %v261
        %348 = vmatpush.msra.mxu0 %v254
        %349 = vmatpush.msra.mxu0 %v244
        %350 = vmatmul.f32.gmra.mxu0 %v312
        %v351 = vpop.f32.mrf.mxu0
        %v352 = vadd.f32 %v308, %v351
        %353 = vdwg.mxu0
        %v354 = vmax.f32 %v332, 0.0
        %v355 = vmax.f32 %v352, 0.0
        %v356 = vld [vmem:[%s3] sm:$0xff]
        %357 = vrot.lane.b32.xlu0 %v354, 127
        %v358 = vpop.permute.xlu0 %357
        %359 = vrot.lane.b32.xlu0 %v355, 127
        %v360 = vpop.permute.xlu0 %359
        %v361 = vsel %vm252, %v358, %v360
        %v362 = vsel %vm252, %v360, %v358
        %363 = vrot.lane.b32.xlu0 %v354, 126
        %v364 = vpop.permute.xlu0 %363
        %365 = vrot.lane.b32.xlu0 %v355, 126
        %v366 = vpop.permute.xlu0 %365
        %v367 = vsel %vm259, %v364, %v366
        %v368 = vsel %vm259, %v366, %v364
        %369 = vrot.lane.b32.xlu0 %v354, 112
        %v370 = vpop.permute.xlu0 %369
        %371 = vrot.lane.b32.xlu0 %v355, 112
        %v372 = vpop.permute.xlu0 %371
        %v373 = vsel %vm266, %v370, %v372
        %v374 = vsel %vm266, %v372, %v370
        %375 = vrot.lane.b32.xlu0 %v354, 111
        %v376 = vpop.permute.xlu0 %375
        %377 = vrot.lane.b32.xlu0 %v355, 111
        %v378 = vpop.permute.xlu0 %377
        %v379 = vsel %vm273, %v376, %v378
        %v380 = vsel %vm273, %v378, %v376
        %381 = vrot.lane.b32.xlu0 %v354, 110
        %v382 = vpop.permute.xlu0 %381
        %383 = vrot.lane.b32.xlu0 %v355, 110
        %v384 = vpop.permute.xlu0 %383
        %v385 = vsel %vm280, %v382, %v384
        %v386 = vsel %vm280, %v384, %v382
        %387 = vrot.lane.b32.xlu0 %v354, 96
        %v388 = vpop.permute.xlu0 %387
        %389 = vrot.lane.b32.xlu0 %v355, 96
        %v390 = vpop.permute.xlu0 %389
        %v391 = vsel %vm287, %v388, %v390
        %v392 = vsel %vm287, %v390, %v388
        %393 = vrot.lane.b32.xlu0 %v354, 95
        %v394 = vpop.permute.xlu0 %393
        %395 = vrot.lane.b32.xlu0 %v355, 95
        %v396 = vpop.permute.xlu0 %395
        %v397 = vsel %vm294, %v394, %v396
        %v398 = vsel %vm294, %v396, %v394
        %399 = vrot.lane.b32.xlu0 %v354, 94
        %v400 = vpop.permute.xlu0 %399
        %401 = vrot.lane.b32.xlu0 %v355, 94
        %v402 = vpop.permute.xlu0 %401
        %v403 = vsel %vm301, %v400, %v402
        %v404 = vsel %vm301, %v402, %v400
        %v405 = vld [vmem:[%s4] sm:$0xff]
        %407 = vset.pattern.permute.xlu0 0
        %408 = vperm.xlu0 %407, %v405
        %v409 = vpop.permute.xlu0 %408
        %v412 = vsel %vm310, %v356, 0
        %414 = vmatpush.msra.mxu0 0.0
        %415 = vmatpush.msra.mxu0 0.0
        %416 = vmatpush.msra.mxu0 0.0
        %417 = vmatpush.msra.mxu0 0.0
        %418 = vmatpush.msra.mxu0 0.0
        %419 = vmatpush.msra.mxu0 0.0
        %420 = vmatpush.msra.mxu0 0.0
        %421 = vmatpush.msra.mxu0 %v403
        %422 = vmatpush.msra.mxu0 %v397
        %423 = vmatpush.msra.mxu0 %v391
        %424 = vmatpush.msra.mxu0 %v385
        %425 = vmatpush.msra.mxu0 %v379
        %426 = vmatpush.msra.mxu0 %v373
        %427 = vmatpush.msra.mxu0 %v367
        %428 = vmatpush.msra.mxu0 %v361
        %429 = vmatpush.msra.mxu0 %v354
        %430 = vmatmul.f32.gmra.mxu0 %v412
        %v431 = vpop.f32.mrf.mxu0
        %v432 = vadd.f32 %v409, %v431
        %433 = vdwg.mxu0
        %434 = vmatpush.msra.mxu0 0.0
        %435 = vmatpush.msra.mxu0 0.0
        %436 = vmatpush.msra.mxu0 0.0
        %437 = vmatpush.msra.mxu0 0.0
        %438 = vmatpush.msra.mxu0 0.0
        %439 = vmatpush.msra.mxu0 0.0
        %440 = vmatpush.msra.mxu0 0.0
        %441 = vmatpush.msra.mxu0 %v404
        %442 = vmatpush.msra.mxu0 %v398
        %443 = vmatpush.msra.mxu0 %v392
        %444 = vmatpush.msra.mxu0 %v386
        %445 = vmatpush.msra.mxu0 %v380
        %446 = vmatpush.msra.mxu0 %v374
        %447 = vmatpush.msra.mxu0 %v368
        %448 = vmatpush.msra.mxu0 %v362
        %449 = vmatpush.msra.mxu0 %v355
        %450 = vmatmul.f32.gmra.mxu0 %v412
        %v451 = vpop.f32.mrf.mxu0
        %v452 = vadd.f32 %v409, %v451
        %453 = vdwg.mxu0
        %454 = vst [vmem:[%s242] sm:$0xff] %v432
        %455 = vst [vmem:[%s242 + $0x8] sm:$0xff] %v452
        %s456 = sand.u32 %s140, 1
        %s457 = scalar_lea.sflag [#allocation4], %s456
        %s458 = sand.u32 %s140, 1
        %s459 = smul.addr %s458, 16
        %s460 = scalar_lea.vmem [#allocation5], %s459
        // Predicated region
        $region45: #{tpu_custom_call.1} parent=39 // pred_check
          %p461 = pneg %p150
        $region46: #{tpu_custom_call.1} parent=39 // pred_check_branch
          %463 = sbr.rel (%p461) target = $region48
        $region47: #{tpu_custom_call.1} parent=39 // pred_region
          %465 = vsyncadd %s457, 0
          %s466 = smul.addr %s22, 2
          %s467 = smul.addr %s466, 8
          %s468 = scalar_lea.hbm %s5, %s467
          %s470 = sshll.u32 %s460, 4
          %s471 = int_to_ptr.vmem [resolvable:$true] %s470
          %s472 = sshll.u32 %s468, 4
          %s473 = int_to_ptr.hbm [resolvable:$true] %s472
          %475 = dma.vmem_to_hbm [thread:$0]  %s471, 256, %s473, %s457
        $region48: #{tpu_custom_call.1} parent=39 // pred_fallthru
          _
      $region40: #{tpu_custom_call.1} parent=5 // pred_fallthru
        _
      %p476 = scmp.le.s32.totalorder 2, %s17
      // Predicated region
      $region49: #{tpu_custom_call.1} parent=5 // pred_check
        %p477 = pneg %p476
      $region50: #{tpu_custom_call.1} parent=5 // pred_check_branch
        %479 = sbr.rel (%p477) target = $region52
      $region51: #{tpu_custom_call.1} parent=5 // pred_region
        %s480 = ssub.s32 %s17, 2
        // Predicated region
        $region53: #{tpu_custom_call.1} parent=51 // pred_check
          %p481 = pneg %p156
        $region54: #{tpu_custom_call.1} parent=51 // pred_check_branch
          %483 = sbr.rel (%p481) target = $region56
        $region55: #{tpu_custom_call.1} parent=51 // pred_region
          %s484 = sand.u32 %s141, 1
          %s485 = scalar_lea.sflag [#allocation4], %s484
          %s486 = sand.u32 %s141, 1
          %s487 = smul.addr %s486, 16
          %s488 = scalar_lea.vmem [#allocation5], %s487
          %490 = dma.done %s485, 256
        $region56: #{tpu_custom_call.1} parent=51 // pred_fallthru
          _
      $region52: #{tpu_custom_call.1} parent=5 // pred_fallthru
        _
    $region6: #{tpu_custom_call.1} parent=1 // loop_footer
      %s21 = sadd.s32 1, %s17
    $region7: #{tpu_custom_call.1} parent=1 // loop_footer_branch
      %16 = sbr.rel target = $region3
    $region8: #{tpu_custom_call.1} parent=1 // loop_exit
      _
    %491 = vsyncpa [#allocation3], 1
    %s492 = scalar_lea.sflag [#allocation3], 1
    %493 = vsyncpa %s492, 1
    %494 = vsyncpa [#allocation4], 1
    %s495 = scalar_lea.sflag [#allocation4], 1
    %496 = vsyncpa %s495, 1

</llo_original>
